<compile_context>
chip_gen: v6e
topology: v6e:2x2x1
jax: 0.10.0
libtpu: 0.0.40
codegen_flags: <defaults>
</compile_context>

<pallas_src>
import jax
import jax.numpy as jnp
from jax.experimental import pallas as pl
from jax.experimental.pallas import tpu as pltpu


def _add3_kernel(x_ref, y_ref, z_ref, o_ref):
    # Hot path: single fused element-wise add on the VPU.
    o_ref[...] = x_ref[...] + y_ref[...] + z_ref[...]


# Below this much total HBM traffic (4N bytes) the custom-call launch and
# pipeline prologue/epilogue dominate; XLA fusion of x+y+z is strictly faster.
_SMALL_BYPASS_TRAFFIC_BYTES = 2 << 20  # 2 MiB


def _vmem_capacity_bytes():
    """Best-effort query of per-core VMEM; conservative (v7x-sized) fallback."""
    try:
        return int(pltpu.get_tpu_info().vmem_capacity_bytes)
    except Exception:
        return 64 << 20


def _block_budget(itemsize):
    """Generation- and dtype-aware (block_elems_per_stream, vmem_limit_bytes)."""
    cap = _vmem_capacity_bytes()
    if cap >= (100 << 20):
        # v5e / v6e: 128 MiB physical VMEM. 4 streams x 2 buffers x 4 MiB = 32 MiB,
        # so raise the scoped limit above v5e's 16 MiB default.
        block_bytes = 4 << 20
        vmem_limit = 64 << 20
    else:
        # v7x: 64 MiB per TensorCore. Keep the working set at 4 x 2 x 2 MiB = 16 MiB
        # so full double-buffering survives (exposed DMA hurts most at 3.2 TB/s HBM).
        block_bytes = 2 << 20
        vmem_limit = 32 << 20
    return block_bytes // itemsize, vmem_limit


def _choose_2d_layout(n):
    """Pick a (rows, lane) factorization with lane a multiple of 128 (lane-dense)."""
    for lane in (2048, 1024, 512, 256, 128):
        if n % lane == 0:
            rows = n // lane
            if rows >= 8 or lane == 128:
                return rows, lane
    return None


def multiple_inputs_model(x, y, z, *, force_kernel=False):
    """Forward pass of MultipleInputsModel: elementwise x + y + z."""
    assert x.shape == y.shape == z.shape
    assert x.dtype == y.dtype == z.dtype
    dtype = x.dtype
    n = x.size
    itemsize = jnp.dtype(dtype).itemsize

    # Small-tensor bypass: let XLA fuse the adds; the kernel only engages where
    # HBM bandwidth (not launch overhead) is the cost.
    if not force_kernel and 4 * n * itemsize <= _SMALL_BYPASS_TRAFFIC_BYTES:
        return x + y + z

    # Lane-dense slab: flatten and, if needed, pad to a multiple of 128 lanes so
    # stores are unmasked vst instead of per-row masked vst.msk.
    pad = (-n) % 128
    n_pad = n + pad
    if pad:
        xf = jnp.pad(x.reshape(-1), (0, pad))
        yf = jnp.pad(y.reshape(-1), (0, pad))
        zf = jnp.pad(z.reshape(-1), (0, pad))
    else:
        xf, yf, zf = x.reshape(-1), y.reshape(-1), z.reshape(-1)

    layout = _choose_2d_layout(n_pad)
    assert layout is not None  # n_pad is a multiple of 128 by construction
    rows, lane = layout

    # Dtype-native sublane tile: 8 (f32), 16 (bf16/f16), 32 (int8/fp8).
    sublane = max(8, 32 // itemsize)
    block_elems, vmem_limit = _block_budget(itemsize)

    # Row-tile: as large as the per-stream VMEM budget allows...
    tm_cap = max(sublane, (block_elems // lane) // sublane * sublane)
    tm = min(tm_cap, rows)
    # ...but keep >= 2 (prefer 4) grid steps when splittable, so both of v7x's
    # TensorCores get work on the "parallel" axis and the DMA pipeline has
    # something to overlap. No-op on single-TC v5e/v6e.
    if rows >= 2 * sublane:
        target_steps = 4 if rows >= 4 * sublane else 2
        per_step = (rows + target_steps - 1) // target_steps
        tm_split = ((per_step + sublane - 1) // sublane) * sublane
        tm = min(tm, tm_split)
    grid = (pl.cdiv(rows, tm),)

    x2 = xf.reshape(rows, lane)
    y2 = yf.reshape(rows, lane)
    z2 = zf.reshape(rows, lane)
    spec = pl.BlockSpec((tm, lane), lambda i: (i, 0))

    cost = pl.CostEstimate(
        flops=2 * n_pad,                      # two adds per element
        transcendentals=0,
        bytes_accessed=4 * n_pad * itemsize,  # read x,y,z + write out
    )

    out2 = pl.pallas_call(
        _add3_kernel,
        out_shape=jax.ShapeDtypeStruct((rows, lane), dtype),
        grid=grid,
        in_specs=[spec, spec, spec],
        out_specs=spec,
        cost_estimate=cost,
        compiler_params=pltpu.CompilerParams(
            dimension_semantics=("parallel",),
            vmem_limit_bytes=vmem_limit,
        ),
    )(x2, y2, z2)

    out_flat = out2.reshape(-1)
    if pad:
        out_flat = out_flat[:n]
    return out_flat.reshape(x.shape)


if __name__ == "__main__":
    key = jax.random.PRNGKey(0)
    kx, ky, kz = jax.random.split(key, 3)

    # Module-consistent small shape: batch=2, channels=4, spatial=16x16.
    shape = (2, 4, 16, 16)
    x = jax.random.normal(kx, shape, dtype=jnp.float32)
    y = jax.random.normal(ky, shape, dtype=jnp.float32)
    z = jax.random.normal(kz, shape, dtype=jnp.float32)
    ref = x + y + z

    # 1) Default path: small-tensor bypass (XLA fusion of the adds).
    out = jax.block_until_ready(multiple_inputs_model(x, y, z))
    assert out.shape == ref.shape and out.dtype == ref.dtype
    assert jnp.allclose(out, ref, atol=1e-6, rtol=1e-6)

    # 2) Forced Pallas path on the same small shape (single 8x256 lane-dense block).
    out_k = jax.block_until_ready(multiple_inputs_model(x, y, z, force_kernel=True))
    assert jnp.allclose(out_k, ref, atol=1e-6, rtol=1e-6)

    # 3) Non-128-aligned size exercises the pad-to-128 lane-dense path.
    shape_odd = (3, 5, 7)
    xo = jax.random.normal(kx, shape_odd, dtype=jnp.float32)
    yo = jax.random.normal(ky, shape_odd, dtype=jnp.float32)
    zo = jax.random.normal(kz, shape_odd, dtype=jnp.float32)
    out_o = jax.block_until_ready(multiple_inputs_model(xo, yo, zo, force_kernel=True))
    assert jnp.allclose(out_o, xo + yo + zo, atol=1e-6, rtol=1e-6)

    # 4) Larger tensor: kernel engages by default with a multi-step "parallel"
    #    grid (exercises row tiling + megacore sharding on v7x).
    shape_big = (512, 1024)
    xb = jax.random.normal(kx, shape_big, dtype=jnp.float32)
    yb = jax.random.normal(ky, shape_big, dtype=jnp.float32)
    zb = jax.random.normal(kz, shape_big, dtype=jnp.float32)
    out_b = jax.block_until_ready(multiple_inputs_model(xb, yb, zb))
    assert jnp.allclose(out_b, xb + yb + zb, atol=1e-6, rtol=1e-6)

    # 5) bf16: dtype-aware sublane tile (16) and byte-sized block budget.
    xh, yh, zh = (a.astype(jnp.bfloat16) for a in (xb, yb, zb))
    out_h = jax.block_until_ready(multiple_inputs_model(xh, yh, zh, force_kernel=True))
    assert out_h.dtype == jnp.bfloat16
    assert jnp.allclose(out_h.astype(jnp.float32),
                        (xh + yh + zh).astype(jnp.float32), atol=1e-2, rtol=1e-2)

    print("KERNEL_OK")
</pallas_src>

<mosaic_0001>
module attributes {stable_mosaic.version = 11 : i64} {
  func.func @_add3_kernel(%arg0: i32, %arg1: memref<8x256xf32, #tpu.memory_space<vmem>>, %arg2: memref<8x256xf32, #tpu.memory_space<vmem>>, %arg3: memref<8x256xf32, #tpu.memory_space<vmem>>, %arg4: memref<8x256xf32, #tpu.memory_space<vmem>>) attributes {dimension_semantics = [#tpu.dimension_semantics<parallel>], iteration_bounds = array<i64: 1>, scalar_prefetch = 0 : i64, scratch_operands = 0 : i64, tpu.core_type = #tpu.core_type<tc>, window_params = [{transform_indices = @transform_0, window_bounds = array<i64: 8, 256>}, {transform_indices = @transform_1, window_bounds = array<i64: 8, 256>}, {transform_indices = @transform_2, window_bounds = array<i64: 8, 256>}, {transform_indices = @transform_3, window_bounds = array<i64: 8, 256>}]} {
    %c0 = arith.constant 0 : index
    %c0_0 = arith.constant 0 : index
    %0 = vector.load %arg1[%c0, %c0_0] : memref<8x256xf32, #tpu.memory_space<vmem>>, vector<8x256xf32>
    %c0_1 = arith.constant 0 : index
    %c0_2 = arith.constant 0 : index
    %1 = vector.load %arg2[%c0_1, %c0_2] : memref<8x256xf32, #tpu.memory_space<vmem>>, vector<8x256xf32>
    %2 = arith.addf %0, %1 : vector<8x256xf32>
    %c0_3 = arith.constant 0 : index
    %c0_4 = arith.constant 0 : index
    %3 = vector.load %arg3[%c0_3, %c0_4] : memref<8x256xf32, #tpu.memory_space<vmem>>, vector<8x256xf32>
    %4 = arith.addf %2, %3 : vector<8x256xf32>
    %c0_5 = arith.constant 0 : index
    %c0_6 = arith.constant 0 : index
    %5 = vector.load %arg4[%c0_5, %c0_6] : memref<8x256xf32, #tpu.memory_space<vmem>>, vector<8x256xf32>
    tpu.vector_store %arg4[%c0_5, %c0_6], %4 {strides = array<i32>} : memref<8x256xf32, #tpu.memory_space<vmem>>, vector<8x256xf32>,
    return
  }
  func.func @transform_0(%arg0: i32) -> (i32, i32) {
    %c0_i32 = arith.constant 0 : i32
    %c0_i32_0 = arith.constant 0 : i32
    return %arg0, %c0_i32 : i32, i32
  }
  func.func @transform_1(%arg0: i32) -> (i32, i32) {
    %c0_i32 = arith.constant 0 : i32
    %c0_i32_0 = arith.constant 0 : i32
    return %arg0, %c0_i32 : i32, i32
  }
  func.func @transform_2(%arg0: i32) -> (i32, i32) {
    %c0_i32 = arith.constant 0 : i32
    %c0_i32_0 = arith.constant 0 : i32
    return %arg0, %c0_i32 : i32, i32
  }
  func.func @transform_3(%arg0: i32) -> (i32, i32) {
    %c0_i32 = arith.constant 0 : i32
    %c0_i32_0 = arith.constant 0 : i32
    return %arg0, %c0_i32 : i32, i32
  }
}

</mosaic_0001>

<llo_original>
// kernel: tpu_custom_call.1
$region0: #{tpu_custom_call.1}
  #allocation0 [shape = 'u32[]', space=smem, size = 0x4, offset = 0x4, fixed_abs, tag = 'smem constant byte address 0x4 - core index']
  #allocation1 [shape = 'u32[144,128]{1,0:T(1,128)}', space=vmem, size = 0x12000, scoped, tag = 'internal scratch']
  %s0 = inlined_call_operand.hbm [shape: f32[8,256], index: 0, kind: input, shape index: {}]
  %s1 = inlined_call_operand.hbm [shape: f32[8,256], index: 1, kind: input, shape index: {}]
  %s2 = inlined_call_operand.hbm [shape: f32[8,256], index: 2, kind: input, shape index: {}]
  %s3 = inlined_call_operand.hbm [shape: f32[8,256], index: 3, kind: output, shape index: {}]
  %s4 = sld [smem:[#allocation0]]
  $region34: #{tpu_custom_call.1} parent=0
    _
  %s6 = ssub.s32 1, %s4
  %s7 = scalar_select 0, %s6, %s4
  $region1: #{tpu_custom_call.1} parent=0
    #allocation2 [shape = 'u8[8192]{0}', space=vmem, size = 0x2000, scoped, tag = 'input window, operand 0, single buffered']
    #allocation3 [shape = 's32[1]{0}', space=sflag, size = 0x4, scoped, tag = 'scoped memory for tpu_custom_call.1']
    #allocation4 [shape = 's32[1]{0}', space=sflag, size = 0x4, scoped, tag = 'scoped memory for tpu_custom_call.1']
    #allocation5 [shape = 'u8[8192]{0}', space=vmem, size = 0x2000, scoped, tag = 'input window, operand 1, single buffered']
    #allocation6 [shape = 's32[1]{0}', space=sflag, size = 0x4, scoped, tag = 'scoped memory for tpu_custom_call.1']
    #allocation7 [shape = 'u8[8192]{0}', space=vmem, size = 0x2000, scoped, tag = 'input window, operand 2, single buffered']
    #allocation8 [shape = 'u8[8192]{0}', space=vmem, size = 0x2000, scoped, tag = 'output window, operand 0, single buffered']
    %8 = vsyncpa [#allocation3], 0
    %9 = vsyncpa [#allocation6], 0
    %10 = vsyncpa [#allocation4], 0
    // Predicated region
    $region2: #{tpu_custom_call.1} parent=1 // pred_check
      _
    $region3: #{tpu_custom_call.1} parent=1 // pred_check_branch
      %12 = sbr.rel (0) target = $region5
    $region4: #{tpu_custom_call.1} parent=1 // pred_region
      %s14 = ssub.s32 256, 256
      %15 = vsyncadd [#allocation3], %s14
      %s17 = sshll.u32 [#allocation2], 4
      %s18 = int_to_ptr.vmem [resolvable:$true] %s17
      %20 = dma.hbm_to_vmem [thread:$0]  %s0, 256, %s18, [#allocation3]
    $region5: #{tpu_custom_call.1} parent=1 // pred_fallthru
      _
    // Predicated region
    $region6: #{tpu_custom_call.1} parent=1 // pred_check
      _
    $region7: #{tpu_custom_call.1} parent=1 // pred_check_branch
      %22 = sbr.rel (0) target = $region9
    $region8: #{tpu_custom_call.1} parent=1 // pred_region
      %s24 = ssub.s32 256, 256
      %25 = vsyncadd [#allocation6], %s24
      %s27 = sshll.u32 [#allocation5], 4
      %s28 = int_to_ptr.vmem [resolvable:$true] %s27
      %30 = dma.hbm_to_vmem [thread:$0]  %s1, 256, %s28, [#allocation6]
    $region9: #{tpu_custom_call.1} parent=1 // pred_fallthru
      _
    // Predicated region
    $region10: #{tpu_custom_call.1} parent=1 // pred_check
      _
    $region11: #{tpu_custom_call.1} parent=1 // pred_check_branch
      %32 = sbr.rel (0) target = $region13
    $region12: #{tpu_custom_call.1} parent=1 // pred_region
      %s34 = ssub.s32 256, 256
      %35 = vsyncadd [#allocation6], %s34
      %s37 = sshll.u32 [#allocation7], 4
      %s38 = int_to_ptr.vmem [resolvable:$true] %s37
      %40 = dma.hbm_to_vmem [thread:$0]  %s2, 256, %s38, [#allocation6]
    $region13: #{tpu_custom_call.1} parent=1 // pred_fallthru
      _
    // Predicated region
    $region14: #{tpu_custom_call.1} parent=1 // pred_check
      _
    $region15: #{tpu_custom_call.1} parent=1 // pred_check_branch
      %42 = sbr.rel (0) target = $region17
    $region16: #{tpu_custom_call.1} parent=1 // pred_region
      %43 = dma.done [#allocation3], 256
    $region17: #{tpu_custom_call.1} parent=1 // pred_fallthru
      _
    // Predicated region
    $region18: #{tpu_custom_call.1} parent=1 // pred_check
      _
    $region19: #{tpu_custom_call.1} parent=1 // pred_check_branch
      %45 = sbr.rel (0) target = $region21
    $region20: #{tpu_custom_call.1} parent=1 // pred_region
      %46 = dma.done [#allocation6], 256
    $region21: #{tpu_custom_call.1} parent=1 // pred_fallthru
      _
    // Predicated region
    $region22: #{tpu_custom_call.1} parent=1 // pred_check
      _
    $region23: #{tpu_custom_call.1} parent=1 // pred_check_branch
      %48 = sbr.rel (0) target = $region25
    $region24: #{tpu_custom_call.1} parent=1 // pred_region
      %49 = dma.done [#allocation6], 256
    $region25: #{tpu_custom_call.1} parent=1 // pred_fallthru
      _
    %v50 = vld [vmem:[#allocation2] sm:$0xff]
    %v51 = vld [vmem:[#allocation2 + $0x8] sm:$0xff]
    %v52 = vld [vmem:[#allocation5] sm:$0xff]
    %v53 = vld [vmem:[#allocation5 + $0x8] sm:$0xff]
    %v54 = vadd.f32 %v50, %v52
    %v55 = vadd.f32 %v51, %v53
    %v56 = vld [vmem:[#allocation7] sm:$0xff]
    %v57 = vld [vmem:[#allocation7 + $0x8] sm:$0xff]
    %v58 = vadd.f32 %v54, %v56
    %v59 = vadd.f32 %v55, %v57
    %60 = vst [vmem:[#allocation8] sm:$0xff] %v58
    %61 = vst [vmem:[#allocation8 + $0x8] sm:$0xff] %v59
    // Predicated region
    $region26: #{tpu_custom_call.1} parent=1 // pred_check
      _
    $region27: #{tpu_custom_call.1} parent=1 // pred_check_branch
      %63 = sbr.rel (0) target = $region29
    $region28: #{tpu_custom_call.1} parent=1 // pred_region
      %s65 = ssub.s32 256, 256
      %66 = vsyncadd [#allocation4], %s65
      %s68 = sshll.u32 [#allocation8], 4
      %s69 = int_to_ptr.vmem [resolvable:$true] %s68
      %71 = dma.vmem_to_hbm [thread:$0]  %s69, 256, %s3, [#allocation4]
    $region29: #{tpu_custom_call.1} parent=1 // pred_fallthru
      _
    // Predicated region
    $region30: #{tpu_custom_call.1} parent=1 // pred_check
      _
    $region31: #{tpu_custom_call.1} parent=1 // pred_check_branch
      %73 = sbr.rel (0) target = $region33
    $region32: #{tpu_custom_call.1} parent=1 // pred_region
      %74 = dma.done [#allocation4], 256
    $region33: #{tpu_custom_call.1} parent=1 // pred_fallthru
      _
    %75 = vsyncpa [#allocation3], 1
    %76 = vsyncpa [#allocation6], 1
    %77 = vsyncpa [#allocation4], 1

</llo_original>
